<compile_context>
chip_gen: v7x
topology: tpu7x:2x2x1
jax: 0.10.0
libtpu: 0.0.40
codegen_flags: <defaults>
</compile_context>

<pallas_src>
import functools
import math

import jax
import jax.numpy as jnp
from jax.experimental import pallas as pl
from jax.experimental.pallas import tpu as pltpu

_LANE = 128          # lane width: pad all feature dims to multiples of this
_SUBLANE = 16        # batch-tile multiple (covers f32 (8) and bf16 (16) sublane packing)
_MXU_TILE_B = 256    # default batch tile for large batches (MXU M dim on v6e/v7x)


def _round_up(x: int, m: int) -> int:
    return (x + m - 1) // m * m


# ----------------------------- kernel ----------------------------------------

def _mlp_kernel(n_blocks, activation, *refs):
    """Fused MLP forward for one (TILE_B, d_in_pad) batch tile.

    refs layout:
      refs[0]                      : x_ref  [TILE_B, d_in_pad]
      refs[1 + 2*i], refs[2 + 2*i] : block i  W [d_prev_pad, d_layer_pad], b [1, d_layer_pad]
      refs[1 + 2*n_blocks]         : head W [d_layer_pad, d_out_pad]
      refs[2 + 2*n_blocks]         : head b [1, d_out_pad]
      refs[3 + 2*n_blocks]         : o_ref  [TILE_B, d_out_pad]
    """
    x_ref = refs[0]
    o_ref = refs[-1]
    compute_dtype = x_ref.dtype

    h = x_ref[...]  # native dtype (e.g. bf16) straight into the MXU

    # blocks: Linear -> activation -> dropout(identity in eval)
    for i in range(n_blocks):
        w_ref = refs[1 + 2 * i]
        b_ref = refs[2 + 2 * i]
        # same-dtype operands (pre-cast in wrapper); f32 accumulation on the MXU
        acc = jnp.dot(h, w_ref[...], preferred_element_type=jnp.float32)
        acc = acc + b_ref[...].astype(jnp.float32)
        if activation == "ReLU":
            acc = jnp.maximum(acc, 0.0)
        elif activation == "GELU":
            acc = jax.nn.gelu(acc)
        else:
            raise ValueError(f"unsupported activation: {activation}")
        h = acc.astype(compute_dtype)  # back to bf16/native before next MXU pass

    # head: plain Linear (no activation)
    hw_ref = refs[1 + 2 * n_blocks]
    hb_ref = refs[2 + 2 * n_blocks]
    y = jnp.dot(h, hw_ref[...], preferred_element_type=jnp.float32)
    y = y + hb_ref[...].astype(jnp.float32)

    o_ref[...] = y.astype(o_ref.dtype)


# ----------------------------- wrapper ----------------------------------------

def prepare_mlp_params(d_in, block_params, head_params, compute_dtype):
    """Pad all feature dims to multiples of 128 and cast params to `compute_dtype`.

    Call ONCE at init; the per-forward path then only pads x. Zero padding keeps
    the numerics unchanged for ReLU/GELU blocks followed by Linear layers."""
    d_in_p = _round_up(d_in, _LANE)

    ws, bs = [], []
    d_prev_p = d_in_p
    for (w, b) in block_params:
        dp, dl = w.shape
        dl_p = _round_up(dl, _LANE)
        w_p = (jnp.zeros((d_prev_p, dl_p), compute_dtype)
               .at[:dp, :dl].set(w.astype(compute_dtype)))
        b_p = (jnp.zeros((1, dl_p), compute_dtype)
               .at[0, :dl].set(b.astype(compute_dtype)))
        ws.append(w_p)
        bs.append(b_p)
        d_prev_p = dl_p

    hw, hb = head_params
    d_out = hw.shape[1]
    d_out_p = _round_up(d_out, _LANE)
    hw_p = (jnp.zeros((d_prev_p, d_out_p), compute_dtype)
            .at[:hw.shape[0], :d_out].set(hw.astype(compute_dtype)))
    hb_p = (jnp.zeros((1, d_out_p), compute_dtype)
            .at[0, :d_out].set(hb.astype(compute_dtype)))

    return dict(d_in=d_in, d_in_p=d_in_p, d_out=d_out, d_out_p=d_out_p,
                ws=ws, bs=bs, hw=hw_p, hb=hb_p, dtype=compute_dtype)


def mlp_forward_padded(x, params, *, activation="ReLU", tile_b=None):
    """x: [B, d_in]; params: output of prepare_mlp_params. Returns [B, d_out]."""
    B, d_in = x.shape
    assert d_in == params["d_in"], (d_in, params["d_in"])
    dtype = params["dtype"]
    n_blocks = len(params["ws"])
    d_in_p, d_out_p = params["d_in_p"], params["d_out_p"]

    # --- batch tiling: MXU-aligned; collapse small batches to one grid step ---
    if tile_b is None:
        b_min = _round_up(B, _SUBLANE)
        if b_min <= _MXU_TILE_B:
            tile_b = b_min          # single grid step: no pipeline bubbles / step overhead
        else:
            tile_b = _MXU_TILE_B    # 256: fills the MXU M dim on v6e/v7x (2x128 on v5e)
    tile_b = max(_SUBLANE, _round_up(tile_b, _SUBLANE))
    b_pad = _round_up(B, tile_b)

    # --- only x is padded per call; params were padded/cast once at init -------
    x_c = x.astype(dtype)
    if (b_pad, d_in_p) != (B, d_in):
        x_c = jnp.zeros((b_pad, d_in_p), dtype).at[:B, :d_in].set(x_c)

    operands = [x_c]
    weight_shapes = []
    for w_p, b_p in zip(params["ws"], params["bs"]):
        operands += [w_p, b_p]
        weight_shapes += [w_p.shape, b_p.shape]
    operands += [params["hw"], params["hb"]]
    weight_shapes += [params["hw"].shape, params["hb"].shape]

    # --- explicit VMEM budget ---------------------------------------------------
    bytes_per = jnp.dtype(dtype).itemsize
    resident_bytes = sum(math.prod(s) for s in weight_shapes) * bytes_per
    io_bytes = 2 * tile_b * (d_in_p + d_out_p) * bytes_per          # double-buffered x/out tiles
    act_bytes = tile_b * max(s[-1] for s in weight_shapes) * 4      # f32 accumulator live range
    needed = int((2 * resident_bytes + io_bytes + act_bytes) * 1.25)
    vmem_limit = int(min(64 * 2**20, max(32 * 2**20, needed)))
    # TODO(synk): if resident_bytes approaches ~0.5 * 64 MiB (v7x per-TC VMEM), switch to a
    # streamed-weight path (K/N-tiled grid or pltpu.emit_pipeline) instead of all-resident.

    kernel = functools.partial(_mlp_kernel, n_blocks, activation)

    def build_specs(single_buffer_weights):
        specs = [pl.BlockSpec((tile_b, d_in_p), lambda i: (i, 0))]
        for shp in weight_shapes:
            if single_buffer_weights:
                # constant-index residents: single buffer (they are DMA'd once)
                specs.append(pl.BlockSpec(shp, lambda i: (0, 0),
                                          pipeline_mode=pl.Buffered(1)))
            else:
                specs.append(pl.BlockSpec(shp, lambda i: (0, 0)))
        return specs

    def run(single_buffer_weights):
        return pl.pallas_call(
            kernel,
            out_shape=jax.ShapeDtypeStruct((b_pad, d_out_p), dtype),
            grid=(b_pad // tile_b,),
            in_specs=build_specs(single_buffer_weights),
            out_specs=pl.BlockSpec((tile_b, d_out_p), lambda i: (i, 0)),
            compiler_params=pltpu.CompilerParams(
                dimension_semantics=("parallel",),   # megacore sharding on v7x
                vmem_limit_bytes=vmem_limit,
            ),
        )(*operands)

    try:
        y_p = run(True)     # single-buffered resident weights
    except Exception:
        y_p = run(False)    # fallback for jax versions without pipeline_mode/Buffered(1)

    return y_p[:B, :params["d_out"]]


def mlp_forward(x, block_params, head_params, *, activation="ReLU", tile_b=None):
    """Convenience one-shot API (pads params on every call). Prefer
    prepare_mlp_params + mlp_forward_padded for repeated inference."""
    params = prepare_mlp_params(x.shape[1], block_params, head_params, x.dtype)
    return mlp_forward_padded(x, params, activation=activation, tile_b=tile_b)


# --------------------------- reference & test --------------------------------

def _linear_init(key, d_in, d_out, dtype=jnp.float32):
    """nn.Linear-style init (uniform +-1/sqrt(d_in)); W returned as [d_in, d_out]."""
    kw, kb = jax.random.split(key)
    bound = 1.0 / math.sqrt(d_in)
    w = jax.random.uniform(kw, (d_in, d_out), dtype, minval=-bound, maxval=bound)
    b = jax.random.uniform(kb, (d_out,), dtype, minval=-bound, maxval=bound)
    return w, b


def jax_reference(x, block_params, head_params, activation="ReLU"):
    """Mimics the kernel's dtype handling: operands cast to x.dtype, f32 accumulation,
    activation in f32, cast back to x.dtype between blocks."""
    dt = x.dtype
    h = x
    for w, b in block_params:
        acc = jnp.dot(h, w.astype(dt), preferred_element_type=jnp.float32)
        acc = acc + b.astype(dt).astype(jnp.float32)
        acc = jnp.maximum(acc, 0.0) if activation == "ReLU" else jax.nn.gelu(acc)
        h = acc.astype(dt)
    hw, hb = head_params
    y = jnp.dot(h, hw.astype(dt), preferred_element_type=jnp.float32)
    y = y + hb.astype(dt).astype(jnp.float32)
    return y.astype(dt)


if __name__ == "__main__":
    # MLP(d_in=32, d_out=8, n_blocks=2, d_layer=64, activation='ReLU', dropout=0.1)
    d_in, d_layer, d_out, n_blocks = 32, 64, 8, 2
    batch = 40

    key = jax.random.PRNGKey(0)
    keys = jax.random.split(key, n_blocks + 3)

    x_f32 = jax.random.normal(keys[0], (batch, d_in), jnp.float32)

    block_params_f32 = []
    d_prev = d_in
    for i in range(n_blocks):
        block_params_f32.append(_linear_init(keys[1 + i], d_prev, d_layer))
        d_prev = d_layer
    head_params_f32 = _linear_init(keys[1 + n_blocks], d_layer, d_out)

    # ---- f32 path (exact check vs f32 reference); default tile -> single grid step ----
    params32 = prepare_mlp_params(d_in, block_params_f32, head_params_f32, jnp.float32)
    y32 = mlp_forward_padded(x_f32, params32, activation="ReLU")
    y32 = jax.block_until_ready(y32)
    y32_ref = jax_reference(x_f32, block_params_f32, head_params_f32, "ReLU")
    assert y32.shape == (batch, d_out)
    assert jnp.allclose(y32, y32_ref, atol=1e-4, rtol=1e-4)

    # ---- bf16 path (native-dtype MXU operands, f32 accumulation); params prepared once ----
    params16 = prepare_mlp_params(d_in, block_params_f32, head_params_f32, jnp.bfloat16)
    x_bf16 = x_f32.astype(jnp.bfloat16)

    y16 = mlp_forward_padded(x_bf16, params16, activation="ReLU")
    y16 = jax.block_until_ready(y16)
    y16_ref = jax_reference(x_bf16, block_params_f32, head_params_f32, "ReLU")
    assert y16.shape == (batch, d_out)
    assert jnp.allclose(y16.astype(jnp.float32), y16_ref.astype(jnp.float32),
                        atol=2e-2, rtol=2e-2)
    # loose check against the full-f32 math of the original module
    assert jnp.allclose(y16.astype(jnp.float32), y32_ref, atol=5e-2, rtol=5e-2)

    # ---- larger batch: exercises the multi-step batch grid (tile_b=256 -> 2 steps) ----
    big_batch = 300
    x_big = jax.random.normal(keys[-1], (big_batch, d_in), jnp.float32).astype(jnp.bfloat16)
    y_big = mlp_forward_padded(x_big, params16, activation="ReLU")
    y_big = jax.block_until_ready(y_big)
    y_big_ref = jax_reference(x_big, block_params_f32, head_params_f32, "ReLU")
    assert y_big.shape == (big_batch, d_out)
    assert jnp.allclose(y_big.astype(jnp.float32), y_big_ref.astype(jnp.float32),
                        atol=2e-2, rtol=2e-2)

    print("KERNEL_OK")
</pallas_src>

<mosaic_0001>
module attributes {stable_mosaic.version = 11 : i64} {
  func.func @_mlp_kernel(%arg0: i32, %arg1: memref<48x128xf32, #tpu.memory_space<vmem>>, %arg2: memref<128x128xf32, #tpu.memory_space<vmem>>, %arg3: memref<1x128xf32, #tpu.memory_space<vmem>>, %arg4: memref<128x128xf32, #tpu.memory_space<vmem>>, %arg5: memref<1x128xf32, #tpu.memory_space<vmem>>, %arg6: memref<128x128xf32, #tpu.memory_space<vmem>>, %arg7: memref<1x128xf32, #tpu.memory_space<vmem>>, %arg8: memref<48x128xf32, #tpu.memory_space<vmem>>) attributes {dimension_semantics = [#tpu.dimension_semantics<parallel>], iteration_bounds = array<i64: 1>, scalar_prefetch = 0 : i64, scratch_operands = 0 : i64, tpu.core_type = #tpu.core_type<tc>, window_params = [{transform_indices = @transform_0, window_bounds = array<i64: 48, 128>}, {pipeline_mode = #tpu.pipeline_mode<synchronous>, transform_indices = @transform_1, window_bounds = array<i64: 128, 128>}, {pipeline_mode = #tpu.pipeline_mode<synchronous>, transform_indices = @transform_2, window_bounds = array<i64: 1, 128>}, {pipeline_mode = #tpu.pipeline_mode<synchronous>, transform_indices = @transform_3, window_bounds = array<i64: 128, 128>}, {pipeline_mode = #tpu.pipeline_mode<synchronous>, transform_indices = @transform_4, window_bounds = array<i64: 1, 128>}, {pipeline_mode = #tpu.pipeline_mode<synchronous>, transform_indices = @transform_5, window_bounds = array<i64: 128, 128>}, {pipeline_mode = #tpu.pipeline_mode<synchronous>, transform_indices = @transform_6, window_bounds = array<i64: 1, 128>}, {transform_indices = @transform_7, window_bounds = array<i64: 48, 128>}]} {
    %c0 = arith.constant 0 : index
    %c0_0 = arith.constant 0 : index
    %0 = vector.load %arg1[%c0, %c0_0] : memref<48x128xf32, #tpu.memory_space<vmem>>, vector<48x128xf32>
    %c0_1 = arith.constant 0 : index
    %c0_2 = arith.constant 0 : index
    %1 = vector.load %arg2[%c0_1, %c0_2] : memref<128x128xf32, #tpu.memory_space<vmem>>, vector<128x128xf32>
    %cst = arith.constant dense<0.000000e+00> : vector<48x128xf32>
    %2 = tpu.matmul %0, %1, %cst {dimension_numbers = #tpu.dot_dimension_numbers<[1], [0], [0], [1], [0, 0, 1, 1], [], []>} : vector<48x128xf32>, vector<128x128xf32>, vector<48x128xf32> -> vector<48x128xf32>
    %c0_3 = arith.constant 0 : index
    %c0_4 = arith.constant 0 : index
    %3 = vector.load %arg3[%c0_3, %c0_4] : memref<1x128xf32, #tpu.memory_space<vmem>>, vector<1x128xf32>
    %4 = vector.broadcast %3 : vector<1x128xf32> to vector<48x128xf32>
    %5 = arith.addf %2, %4 : vector<48x128xf32>
    %cst_5 = arith.constant 0.000000e+00 : f32
    %6 = vector.broadcast %cst_5 : f32 to vector<48x128xf32>
    %7 = arith.maximumf %5, %6 : vector<48x128xf32>
    %c0_6 = arith.constant 0 : index
    %c0_7 = arith.constant 0 : index
    %8 = vector.load %arg4[%c0_6, %c0_7] : memref<128x128xf32, #tpu.memory_space<vmem>>, vector<128x128xf32>
    %cst_8 = arith.constant dense<0.000000e+00> : vector<48x128xf32>
    %9 = tpu.matmul %7, %8, %cst_8 {dimension_numbers = #tpu.dot_dimension_numbers<[1], [0], [0], [1], [0, 0, 1, 1], [], []>} : vector<48x128xf32>, vector<128x128xf32>, vector<48x128xf32> -> vector<48x128xf32>
    %c0_9 = arith.constant 0 : index
    %c0_10 = arith.constant 0 : index
    %10 = vector.load %arg5[%c0_9, %c0_10] : memref<1x128xf32, #tpu.memory_space<vmem>>, vector<1x128xf32>
    %11 = vector.broadcast %10 : vector<1x128xf32> to vector<48x128xf32>
    %12 = arith.addf %9, %11 : vector<48x128xf32>
    %cst_11 = arith.constant 0.000000e+00 : f32
    %13 = vector.broadcast %cst_11 : f32 to vector<48x128xf32>
    %14 = arith.maximumf %12, %13 : vector<48x128xf32>
    %c0_12 = arith.constant 0 : index
    %c0_13 = arith.constant 0 : index
    %15 = vector.load %arg6[%c0_12, %c0_13] : memref<128x128xf32, #tpu.memory_space<vmem>>, vector<128x128xf32>
    %cst_14 = arith.constant dense<0.000000e+00> : vector<48x128xf32>
    %16 = tpu.matmul %14, %15, %cst_14 {dimension_numbers = #tpu.dot_dimension_numbers<[1], [0], [0], [1], [0, 0, 1, 1], [], []>} : vector<48x128xf32>, vector<128x128xf32>, vector<48x128xf32> -> vector<48x128xf32>
    %c0_15 = arith.constant 0 : index
    %c0_16 = arith.constant 0 : index
    %17 = vector.load %arg7[%c0_15, %c0_16] : memref<1x128xf32, #tpu.memory_space<vmem>>, vector<1x128xf32>
    %18 = vector.broadcast %17 : vector<1x128xf32> to vector<48x128xf32>
    %19 = arith.addf %16, %18 : vector<48x128xf32>
    %c0_17 = arith.constant 0 : index
    %c0_18 = arith.constant 0 : index
    %20 = vector.load %arg8[%c0_17, %c0_18] : memref<48x128xf32, #tpu.memory_space<vmem>>, vector<48x128xf32>
    tpu.vector_store %arg8[%c0_17, %c0_18], %19 {strides = array<i32>} : memref<48x128xf32, #tpu.memory_space<vmem>>, vector<48x128xf32>,
    return
  }
  func.func @transform_0(%arg0: i32) -> (i32, i32) {
    %c0_i32 = arith.constant 0 : i32
    %c0_i32_0 = arith.constant 0 : i32
    return %arg0, %c0_i32 : i32, i32
  }
  func.func @transform_1(%arg0: i32) -> (i32, i32) {
    %c0_i32 = arith.constant 0 : i32
    %c0_i32_0 = arith.constant 0 : i32
    %c0_i32_1 = arith.constant 0 : i32
    return %c0_i32, %c0_i32_0 : i32, i32
  }
  func.func @transform_2(%arg0: i32) -> (i32, i32) {
    %c0_i32 = arith.constant 0 : i32
    %c0_i32_0 = arith.constant 0 : i32
    %c0_i32_1 = arith.constant 0 : i32
    return %c0_i32, %c0_i32_0 : i32, i32
  }
  func.func @transform_3(%arg0: i32) -> (i32, i32) {
    %c0_i32 = arith.constant 0 : i32
    %c0_i32_0 = arith.constant 0 : i32
    %c0_i32_1 = arith.constant 0 : i32
    return %c0_i32, %c0_i32_0 : i32, i32
  }
  func.func @transform_4(%arg0: i32) -> (i32, i32) {
    %c0_i32 = arith.constant 0 : i32
    %c0_i32_0 = arith.constant 0 : i32
    %c0_i32_1 = arith.constant 0 : i32
    return %c0_i32, %c0_i32_0 : i32, i32
  }
  func.func @transform_5(%arg0: i32) -> (i32, i32) {
    %c0_i32 = arith.constant 0 : i32
    %c0_i32_0 = arith.constant 0 : i32
    %c0_i32_1 = arith.constant 0 : i32
    return %c0_i32, %c0_i32_0 : i32, i32
  }
  func.func @transform_6(%arg0: i32) -> (i32, i32) {
    %c0_i32 = arith.constant 0 : i32
    %c0_i32_0 = arith.constant 0 : i32
    %c0_i32_1 = arith.constant 0 : i32
    return %c0_i32, %c0_i32_0 : i32, i32
  }
  func.func @transform_7(%arg0: i32) -> (i32, i32) {
    %c0_i32 = arith.constant 0 : i32
    %c0_i32_0 = arith.constant 0 : i32
    return %arg0, %c0_i32 : i32, i32
  }
}

module attributes {stable_mosaic.version = 11 : i64} {
  func.func @_mlp_kernel(%arg0: i32, %arg1: memref<48x128xf32, #tpu.memory_space<vmem>>, %arg2: memref<128x128xf32, #tpu.memory_space<vmem>>, %arg3: memref<1x128xf32, #tpu.memory_space<vmem>>, %arg4: memref<128x128xf32, #tpu.memory_space<vmem>>, %arg5: memref<1x128xf32, #tpu.memory_space<vmem>>, %arg6: memref<128x128xf32, #tpu.memory_space<vmem>>, %arg7: memref<1x128xf32, #tpu.memory_space<vmem>>, %arg8: memref<48x128xf32, #tpu.memory_space<vmem>>) attributes {dimension_semantics = [#tpu.dimension_semantics<parallel>], iteration_bounds = array<i64: 1>, scalar_prefetch = 0 : i64, scratch_operands = 0 : i64, tpu.core_type = #tpu.core_type<tc>, window_params = [{transform_indices = @transform_0, window_bounds = array<i64: 48, 128>}, {pipeline_mode = #tpu.pipeline_mode<synchronous>, transform_indices = @transform_1, window_bounds = array<i64: 128, 128>}, {pipeline_mode = #tpu.pipeline_mode<synchronous>, transform_indices = @transform_2, window_bounds = array<i64: 1, 128>}, {pipeline_mode = #tpu.pipeline_mode<synchronous>, transform_indices = @transform_3, window_bounds = array<i64: 128, 128>}, {pipeline_mode = #tpu.pipeline_mode<synchronous>, transform_indices = @transform_4, window_bounds = array<i64: 1, 128>}, {pipeline_mode = #tpu.pipeline_mode<synchronous>, transform_indices = @transform_5, window_bounds = array<i64: 128, 128>}, {pipeline_mode = #tpu.pipeline_mode<synchronous>, transform_indices = @transform_6, window_bounds = array<i64: 1, 128>}, {transform_indices = @transform_7, window_bounds = array<i64: 48, 128>}]} {
    %c0 = arith.constant 0 : index
    %c0_0 = arith.constant 0 : index
    %0 = vector.load %arg1[%c0, %c0_0] : memref<48x128xf32, #tpu.memory_space<vmem>>, vector<48x128xf32>
    %c0_1 = arith.constant 0 : index
    %c0_2 = arith.constant 0 : index
    %1 = vector.load %arg2[%c0_1, %c0_2] : memref<128x128xf32, #tpu.memory_space<vmem>>, vector<128x128xf32>
    %cst = arith.constant dense<0.000000e+00> : vector<48x128xf32>
    %2 = tpu.matmul %0, %1, %cst {dimension_numbers = #tpu.dot_dimension_numbers<[1], [0], [0], [1], [0, 0, 1, 1], [], []>} : vector<48x128xf32>, vector<128x128xf32>, vector<48x128xf32> -> vector<48x128xf32>
    %c0_3 = arith.constant 0 : index
    %c0_4 = arith.constant 0 : index
    %3 = vector.load %arg3[%c0_3, %c0_4] : memref<1x128xf32, #tpu.memory_space<vmem>>, vector<1x128xf32>
    %4 = vector.broadcast %3 : vector<1x128xf32> to vector<48x128xf32>
    %5 = arith.addf %2, %4 : vector<48x128xf32>
    %cst_5 = arith.constant 0.000000e+00 : f32
    %6 = vector.broadcast %cst_5 : f32 to vector<48x128xf32>
    %7 = arith.maximumf %5, %6 : vector<48x128xf32>
    %c0_6 = arith.constant 0 : index
    %c0_7 = arith.constant 0 : index
    %8 = vector.load %arg4[%c0_6, %c0_7] : memref<128x128xf32, #tpu.memory_space<vmem>>, vector<128x128xf32>
    %cst_8 = arith.constant dense<0.000000e+00> : vector<48x128xf32>
    %9 = tpu.matmul %7, %8, %cst_8 {dimension_numbers = #tpu.dot_dimension_numbers<[1], [0], [0], [1], [0, 0, 1, 1], [], []>} : vector<48x128xf32>, vector<128x128xf32>, vector<48x128xf32> -> vector<48x128xf32>
    %c0_9 = arith.constant 0 : index
    %c0_10 = arith.constant 0 : index
    %10 = vector.load %arg5[%c0_9, %c0_10] : memref<1x128xf32, #tpu.memory_space<vmem>>, vector<1x128xf32>
    %11 = vector.broadcast %10 : vector<1x128xf32> to vector<48x128xf32>
    %12 = arith.addf %9, %11 : vector<48x128xf32>
    %cst_11 = arith.constant 0.000000e+00 : f32
    %13 = vector.broadcast %cst_11 : f32 to vector<48x128xf32>
    %14 = arith.maximumf %12, %13 : vector<48x128xf32>
    %c0_12 = arith.constant 0 : index
    %c0_13 = arith.constant 0 : index
    %15 = vector.load %arg6[%c0_12, %c0_13] : memref<128x128xf32, #tpu.memory_space<vmem>>, vector<128x128xf32>
    %cst_14 = arith.constant dense<0.000000e+00> : vector<48x128xf32>
    %16 = tpu.matmul %14, %15, %cst_14 {dimension_numbers = #tpu.dot_dimension_numbers<[1], [0], [0], [1], [0, 0, 1, 1], [], []>} : vector<48x128xf32>, vector<128x128xf32>, vector<48x128xf32> -> vector<48x128xf32>
    %c0_15 = arith.constant 0 : index
    %c0_16 = arith.constant 0 : index
    %17 = vector.load %arg7[%c0_15, %c0_16] : memref<1x128xf32, #tpu.memory_space<vmem>>, vector<1x128xf32>
    %18 = vector.broadcast %17 : vector<1x128xf32> to vector<48x128xf32>
    %19 = arith.addf %16, %18 : vector<48x128xf32>
    %c0_17 = arith.constant 0 : index
    %c0_18 = arith.constant 0 : index
    %20 = vector.load %arg8[%c0_17, %c0_18] : memref<48x128xf32, #tpu.memory_space<vmem>>, vector<48x128xf32>
    tpu.vector_store %arg8[%c0_17, %c0_18], %19 {strides = array<i32>} : memref<48x128xf32, #tpu.memory_space<vmem>>, vector<48x128xf32>,
    return
  }
  func.func @transform_0(%arg0: i32) -> (i32, i32) {
    %c0_i32 = arith.constant 0 : i32
    %c0_i32_0 = arith.constant 0 : i32
    return %arg0, %c0_i32 : i32, i32
  }
  func.func @transform_1(%arg0: i32) -> (i32, i32) {
    %c0_i32 = arith.constant 0 : i32
    %c0_i32_0 = arith.constant 0 : i32
    %c0_i32_1 = arith.constant 0 : i32
    return %c0_i32, %c0_i32_0 : i32, i32
  }
  func.func @transform_2(%arg0: i32) -> (i32, i32) {
    %c0_i32 = arith.constant 0 : i32
    %c0_i32_0 = arith.constant 0 : i32
    %c0_i32_1 = arith.constant 0 : i32
    return %c0_i32, %c0_i32_0 : i32, i32
  }
  func.func @transform_3(%arg0: i32) -> (i32, i32) {
    %c0_i32 = arith.constant 0 : i32
    %c0_i32_0 = arith.constant 0 : i32
    %c0_i32_1 = arith.constant 0 : i32
    return %c0_i32, %c0_i32_0 : i32, i32
  }
  func.func @transform_4(%arg0: i32) -> (i32, i32) {
    %c0_i32 = arith.constant 0 : i32
    %c0_i32_0 = arith.constant 0 : i32
    %c0_i32_1 = arith.constant 0 : i32
    return %c0_i32, %c0_i32_0 : i32, i32
  }
  func.func @transform_5(%arg0: i32) -> (i32, i32) {
    %c0_i32 = arith.constant 0 : i32
    %c0_i32_0 = arith.constant 0 : i32
    %c0_i32_1 = arith.constant 0 : i32
    return %c0_i32, %c0_i32_0 : i32, i32
  }
  func.func @transform_6(%arg0: i32) -> (i32, i32) {
    %c0_i32 = arith.constant 0 : i32
    %c0_i32_0 = arith.constant 0 : i32
    %c0_i32_1 = arith.constant 0 : i32
    return %c0_i32, %c0_i32_0 : i32, i32
  }
  func.func @transform_7(%arg0: i32) -> (i32, i32) {
    %c0_i32 = arith.constant 0 : i32
    %c0_i32_0 = arith.constant 0 : i32
    return %arg0, %c0_i32 : i32, i32
  }
}

</mosaic_0001>

<llo_original>
// kernel: tpu_custom_call.1
$region0: #{tpu_custom_call.1}
  #allocation0 [shape = 'u32[]', space=smem, size = 0x4, offset = 0x4, fixed_abs, tag = 'smem constant byte address 0x4 - core index']
  #allocation1 [shape = 'u32[144,128]{1,0:T(1,128)}', space=vmem, size = 0x12000, scoped, tag = 'internal scratch']
  %s0 = inlined_call_operand.hbm [shape: f32[48,128], index: 0, kind: input, shape index: {}]
  %s1 = inlined_call_operand.hbm [shape: f32[128,128], index: 1, kind: input, shape index: {}]
  %s2 = inlined_call_operand.vmem [shape: f32[1,128], index: 2, kind: input, shape index: {}]
  %s3 = inlined_call_operand.hbm [shape: f32[128,128], index: 3, kind: input, shape index: {}]
  %s4 = inlined_call_operand.vmem [shape: f32[1,128], index: 4, kind: input, shape index: {}]
  %s5 = inlined_call_operand.hbm [shape: f32[128,128], index: 5, kind: input, shape index: {}]
  %s6 = inlined_call_operand.vmem [shape: f32[1,128], index: 6, kind: input, shape index: {}]
  %s7 = inlined_call_operand.hbm [shape: f32[48,128], index: 7, kind: output, shape index: {}]
  %s8 = sld [smem:[#allocation0]]
  $region54: #{tpu_custom_call.1} parent=0
    _
  %s10 = ssub.s32 1, %s8
  %s11 = scalar_select 0, %s10, %s8
  $region1: #{tpu_custom_call.1} parent=0
    #allocation2 [shape = 'u8[24576]{0}', space=vmem, size = 0x6000, scoped, tag = 'input window, operand 0, single buffered']
    #allocation3 [shape = 's32[1]{0}', space=sflag, size = 0x4, scoped, tag = 'scoped memory for tpu_custom_call.1']
    #allocation4 [shape = 's32[1]{0}', space=sflag, size = 0x4, scoped, tag = 'scoped memory for tpu_custom_call.1']
    #allocation5 [shape = 'u8[65536]{0}', space=vmem, size = 0x10000, scoped, tag = 'input window, operand 1, single buffered']
    #allocation6 [shape = 's32[1]{0}', space=sflag, size = 0x4, scoped, tag = 'scoped memory for tpu_custom_call.1']
    #allocation7 [shape = 'u8[65536]{0}', space=vmem, size = 0x10000, scoped, tag = 'input window, operand 3, single buffered']
    #allocation8 [shape = 'u8[65536]{0}', space=vmem, size = 0x10000, scoped, tag = 'input window, operand 5, single buffered']
    #allocation9 [shape = 's32[1]{0}', space=sflag, size = 0x4, scoped, tag = 'scoped memory for tpu_custom_call.1']
    #allocation10 [shape = 'u8[24576]{0}', space=vmem, size = 0x6000, scoped, tag = 'output window, operand 0, single buffered']
    %12 = vsyncpa [#allocation3], 0
    %13 = vsyncpa [#allocation6], 0
    %14 = vsyncpa [#allocation9], 0
    %15 = vsyncpa [#allocation4], 0
    // Predicated region
    $region2: #{tpu_custom_call.1} parent=1 // pred_check
      _
    $region3: #{tpu_custom_call.1} parent=1 // pred_check_branch
      %17 = sbr.rel (0) target = $region5
    $region4: #{tpu_custom_call.1} parent=1 // pred_region
      %s19 = ssub.s32 768, 768
      %20 = vsyncadd [#allocation3], %s19
      %s21 = sshll.u32 [#allocation2], 4
      %s22 = int_to_ptr.vmem [resolvable:$true] %s21
      %27 = dma.hbm_to_vmem [thread:$0]  %s0, 768, %s22, [#allocation3], 128, 128, 8
    $region5: #{tpu_custom_call.1} parent=1 // pred_fallthru
      _
    // Predicated region
    $region6: #{tpu_custom_call.1} parent=1 // pred_check
      _
    $region7: #{tpu_custom_call.1} parent=1 // pred_check_branch
      %29 = sbr.rel (0) target = $region9
    $region8: #{tpu_custom_call.1} parent=1 // pred_region
      %s31 = ssub.s32 2048, 2048
      %32 = vsyncadd [#allocation6], %s31
      %s33 = sshll.u32 [#allocation5], 4
      %s34 = int_to_ptr.vmem [resolvable:$true] %s33
      %39 = dma.hbm_to_vmem [thread:$0]  %s1, 2048, %s34, [#allocation6], 128, 128, 8
    $region9: #{tpu_custom_call.1} parent=1 // pred_fallthru
      _
    // Predicated region
    $region10: #{tpu_custom_call.1} parent=1 // pred_check
      _
    $region11: #{tpu_custom_call.1} parent=1 // pred_check_branch
      %41 = sbr.rel (0) target = $region13
    $region12: #{tpu_custom_call.1} parent=1 // pred_region
      _
    $region13: #{tpu_custom_call.1} parent=1 // pred_fallthru
      _
    // Predicated region
    $region14: #{tpu_custom_call.1} parent=1 // pred_check
      _
    $region15: #{tpu_custom_call.1} parent=1 // pred_check_branch
      %43 = sbr.rel (0) target = $region17
    $region16: #{tpu_custom_call.1} parent=1 // pred_region
      %s45 = ssub.s32 2048, 2048
      %46 = vsyncadd [#allocation6], %s45
      %s47 = sshll.u32 [#allocation7], 4
      %s48 = int_to_ptr.vmem [resolvable:$true] %s47
      %53 = dma.hbm_to_vmem [thread:$0]  %s3, 2048, %s48, [#allocation6], 128, 128, 8
    $region17: #{tpu_custom_call.1} parent=1 // pred_fallthru
      _
    // Predicated region
    $region18: #{tpu_custom_call.1} parent=1 // pred_check
      _
    $region19: #{tpu_custom_call.1} parent=1 // pred_check_branch
      %55 = sbr.rel (0) target = $region21
    $region20: #{tpu_custom_call.1} parent=1 // pred_region
      _
    $region21: #{tpu_custom_call.1} parent=1 // pred_fallthru
      _
    // Predicated region
    $region22: #{tpu_custom_call.1} parent=1 // pred_check
      _
    $region23: #{tpu_custom_call.1} parent=1 // pred_check_branch
      %57 = sbr.rel (0) target = $region25
    $region24: #{tpu_custom_call.1} parent=1 // pred_region
      %s59 = ssub.s32 2048, 2048
      %60 = vsyncadd [#allocation9], %s59
      %s61 = sshll.u32 [#allocation8], 4
      %s62 = int_to_ptr.vmem [resolvable:$true] %s61
      %67 = dma.hbm_to_vmem [thread:$0]  %s5, 2048, %s62, [#allocation9], 128, 128, 8
    $region25: #{tpu_custom_call.1} parent=1 // pred_fallthru
      _
    // Predicated region
    $region26: #{tpu_custom_call.1} parent=1 // pred_check
      _
    $region27: #{tpu_custom_call.1} parent=1 // pred_check_branch
      %69 = sbr.rel (0) target = $region29
    $region28: #{tpu_custom_call.1} parent=1 // pred_region
      _
    $region29: #{tpu_custom_call.1} parent=1 // pred_fallthru
      _
    // Predicated region
    $region30: #{tpu_custom_call.1} parent=1 // pred_check
      _
    $region31: #{tpu_custom_call.1} parent=1 // pred_check_branch
      %71 = sbr.rel (0) target = $region33
    $region32: #{tpu_custom_call.1} parent=1 // pred_region
      %72 = dma.done [#allocation3], 768
    $region33: #{tpu_custom_call.1} parent=1 // pred_fallthru
      _
    // Predicated region
    $region34: #{tpu_custom_call.1} parent=1 // pred_check
      _
    $region35: #{tpu_custom_call.1} parent=1 // pred_check_branch
      %74 = sbr.rel (0) target = $region37
    $region36: #{tpu_custom_call.1} parent=1 // pred_region
      %75 = dma.done [#allocation6], 2048
    $region37: #{tpu_custom_call.1} parent=1 // pred_fallthru
      _
    // Predicated region
    $region38: #{tpu_custom_call.1} parent=1 // pred_check
      _
    $region39: #{tpu_custom_call.1} parent=1 // pred_check_branch
      %77 = sbr.rel (0) target = $region41
    $region40: #{tpu_custom_call.1} parent=1 // pred_region
      %78 = dma.done [#allocation6], 2048
    $region41: #{tpu_custom_call.1} parent=1 // pred_fallthru
      _
    // Predicated region
    $region42: #{tpu_custom_call.1} parent=1 // pred_check
      _
    $region43: #{tpu_custom_call.1} parent=1 // pred_check_branch
      %80 = sbr.rel (0) target = $region45
    $region44: #{tpu_custom_call.1} parent=1 // pred_region
      %81 = dma.done [#allocation9], 2048
    $region45: #{tpu_custom_call.1} parent=1 // pred_fallthru
      _
    %v82 = vld [vmem:[#allocation2] sm:$0xff]
    %v83 = vld [vmem:[#allocation2 + $0x8] sm:$0xff]
    %v84 = vld [vmem:[#allocation2 + $0x10] sm:$0xff]
    %v85 = vld [vmem:[#allocation2 + $0x18] sm:$0xff]
    %v86 = vld [vmem:[#allocation2 + $0x20] sm:$0xff]
    %v87 = vld [vmem:[#allocation2 + $0x28] sm:$0xff]
    %v88 = vld [vmem:[#allocation5] sm:$0xff]
    %v89 = vld [vmem:[#allocation5 + $0x8] sm:$0xff]
    %v90 = vld [vmem:[#allocation5 + $0x10] sm:$0xff]
    %v91 = vld [vmem:[#allocation5 + $0x18] sm:$0xff]
    %v92 = vld [vmem:[#allocation5 + $0x20] sm:$0xff]
    %v93 = vld [vmem:[#allocation5 + $0x28] sm:$0xff]
    %v94 = vld [vmem:[#allocation5 + $0x30] sm:$0xff]
    %v95 = vld [vmem:[#allocation5 + $0x38] sm:$0xff]
    %v96 = vld [vmem:[#allocation5 + $0x40] sm:$0xff]
    %v97 = vld [vmem:[#allocation5 + $0x48] sm:$0xff]
    %v98 = vld [vmem:[#allocation5 + $0x50] sm:$0xff]
    %v99 = vld [vmem:[#allocation5 + $0x58] sm:$0xff]
    %v100 = vld [vmem:[#allocation5 + $0x60] sm:$0xff]
    %v101 = vld [vmem:[#allocation5 + $0x68] sm:$0xff]
    %v102 = vld [vmem:[#allocation5 + $0x70] sm:$0xff]
    %v103 = vld [vmem:[#allocation5 + $0x78] sm:$0xff]
    %v104 = vld [vmem:[%s2] sm:$0x1]
    %v106 = vlaneseq
    %v107 = vshrl.u32 %v106, 7
    %v108 = vsub.s32 0, %v107
    %v109 = vrot.slane %v104, %v108
    %111 = vmatprep.subr.mxu0 0.0
    %112 = vmatpush1.msra.mxu0 %v88
    %113 = vmatprep.subr.mxu0 0.0
    %114 = vmatpush1.msra.mxu0 %v89
    %115 = vmatprep.subr.mxu0 0.0
    %116 = vmatpush1.msra.mxu0 %v90
    %117 = vmatprep.subr.mxu0 0.0
    %118 = vmatpush1.msra.mxu0 %v91
    %119 = vmatprep.subr.mxu0 0.0
    %120 = vmatpush1.msra.mxu0 %v92
    %121 = vmatprep.subr.mxu0 0.0
    %122 = vmatpush1.msra.mxu0 %v93
    %123 = vmatprep.subr.mxu0 0.0
    %124 = vmatpush1.msra.mxu0 %v94
    %125 = vmatprep.subr.mxu0 0.0
    %126 = vmatpush1.msra.mxu0 %v95
    %127 = vmatprep.subr.mxu0 0.0
    %128 = vmatpush1.msra.mxu0 %v96
    %129 = vmatprep.subr.mxu0 0.0
    %130 = vmatpush1.msra.mxu0 %v97
    %131 = vmatprep.subr.mxu0 0.0
    %132 = vmatpush1.msra.mxu0 %v98
    %133 = vmatprep.subr.mxu0 0.0
    %134 = vmatpush1.msra.mxu0 %v99
    %135 = vmatprep.subr.mxu0 0.0
    %136 = vmatpush1.msra.mxu0 %v100
    %137 = vmatprep.subr.mxu0 0.0
    %138 = vmatpush1.msra.mxu0 %v101
    %139 = vmatprep.subr.mxu0 0.0
    %140 = vmatpush1.msra.mxu0 %v102
    %141 = vmatprep.subr.mxu0 0.0
    %142 = vmatpush1.msra.mxu0 %v103
    %143 = vmatprep.subr.mxu0 0.0
    %144 = vmatpush1.msra.mxu0 0.0
    %145 = vmatprep.subr.mxu0 0.0
    %146 = vmatpush1.msra.mxu0 0.0
    %147 = vmatprep.subr.mxu0 0.0
    %148 = vmatpush1.msra.mxu0 0.0
    %149 = vmatprep.subr.mxu0 0.0
    %150 = vmatpush1.msra.mxu0 0.0
    %151 = vmatprep.subr.mxu0 0.0
    %152 = vmatpush1.msra.mxu0 0.0
    %153 = vmatprep.subr.mxu0 0.0
    %154 = vmatpush1.msra.mxu0 0.0
    %155 = vmatprep.subr.mxu0 0.0
    %156 = vmatpush1.msra.mxu0 0.0
    %157 = vmatprep.subr.mxu0 0.0
    %158 = vmatpush1.msra.mxu0 0.0
    %159 = vmatprep.subr.mxu0 0.0
    %160 = vmatpush1.msra.mxu0 0.0
    %161 = vmatprep.subr.mxu0 0.0
    %162 = vmatpush1.msra.mxu0 0.0
    %163 = vmatprep.subr.mxu0 0.0
    %164 = vmatpush1.msra.mxu0 0.0
    %165 = vmatprep.subr.mxu0 0.0
    %166 = vmatpush1.msra.mxu0 0.0
    %167 = vmatprep.subr.mxu0 0.0
    %168 = vmatpush1.msra.mxu0 0.0
    %169 = vmatprep.subr.mxu0 0.0
    %170 = vmatpush1.msra.mxu0 0.0
    %171 = vmatprep.subr.mxu0 0.0
    %172 = vmatpush1.msra.mxu0 0.0
    %173 = vmatprep.subr.mxu0 0.0
    %174 = vmatpush1.msra.mxu0 0.0
    %175 = vmatprep.mubr.f32.mxu0 0.0
    %176 = vmatmul.mubr.f32.gmra.mrb[0].mxu0 %v82
    %v177 = vpop.f32.mrb[0].mxu0
    %v178 = vadd.f32 %v109, %v177
    %v179 = vpop.f32.mrb[0].mxu0
    %180 = vmatprep.mubr.f32.mxu0 0.0
    %181 = vmatmul.mubr.f32.gmra.mrb[0].mxu0 %v83
    %v182 = vpop.f32.mrb[0].mxu0
    %v183 = vadd.f32 %v109, %v182
    %v184 = vpop.f32.mrb[0].mxu0
    %185 = vmatprep.mubr.f32.mxu0 0.0
    %186 = vmatmul.mubr.f32.gmra.mrb[0].mxu0 %v84
    %v187 = vpop.f32.mrb[0].mxu0
    %v188 = vadd.f32 %v109, %v187
    %v189 = vpop.f32.mrb[0].mxu0
    %190 = vmatprep.mubr.f32.mxu0 0.0
    %191 = vmatmul.mubr.f32.gmra.mrb[0].mxu0 %v85
    %v192 = vpop.f32.mrb[0].mxu0
    %v193 = vadd.f32 %v109, %v192
    %v194 = vpop.f32.mrb[0].mxu0
    %195 = vmatprep.mubr.f32.mxu0 0.0
    %196 = vmatmul.mubr.f32.gmra.mrb[0].mxu0 %v86
    %v197 = vpop.f32.mrb[0].mxu0
    %v198 = vadd.f32 %v109, %v197
    %v199 = vpop.f32.mrb[0].mxu0
    %200 = vmatprep.mubr.f32.mxu0 0.0
    %201 = vmatmul.mubr.f32.gmra.mrb[0].mxu0 %v87
    %v202 = vpop.f32.mrb[0].mxu0
    %v203 = vadd.f32 %v109, %v202
    %v204 = vpop.f32.mrb[0].mxu0
    %205 = vdwg.mxu0
    %v206 = vmax.f32 %v178, 0.0
    %v207 = vmax.f32 %v183, 0.0
    %v208 = vmax.f32 %v188, 0.0
    %v209 = vmax.f32 %v193, 0.0
    %v210 = vmax.f32 %v198, 0.0
    %v211 = vmax.f32 %v203, 0.0
    %v212 = vld [vmem:[#allocation7] sm:$0xff]
    %v213 = vld [vmem:[#allocation7 + $0x8] sm:$0xff]
    %v214 = vld [vmem:[#allocation7 + $0x10] sm:$0xff]
    %v215 = vld [vmem:[#allocation7 + $0x18] sm:$0xff]
    %v216 = vld [vmem:[#allocation7 + $0x20] sm:$0xff]
    %v217 = vld [vmem:[#allocation7 + $0x28] sm:$0xff]
    %v218 = vld [vmem:[#allocation7 + $0x30] sm:$0xff]
    %v219 = vld [vmem:[#allocation7 + $0x38] sm:$0xff]
    %v220 = vld [vmem:[#allocation7 + $0x40] sm:$0xff]
    %v221 = vld [vmem:[#allocation7 + $0x48] sm:$0xff]
    %v222 = vld [vmem:[#allocation7 + $0x50] sm:$0xff]
    %v223 = vld [vmem:[#allocation7 + $0x58] sm:$0xff]
    %v224 = vld [vmem:[#allocation7 + $0x60] sm:$0xff]
    %v225 = vld [vmem:[#allocation7 + $0x68] sm:$0xff]
    %v226 = vld [vmem:[#allocation7 + $0x70] sm:$0xff]
    %v227 = vld [vmem:[#allocation7 + $0x78] sm:$0xff]
    %v228 = vld [vmem:[%s4] sm:$0x1]
    %v230 = vlaneseq
    %v231 = vshrl.u32 %v230, 7
    %v232 = vsub.s32 0, %v231
    %v233 = vrot.slane %v228, %v232
    %235 = vmatprep.subr.mxu0 0.0
    %236 = vmatpush1.msra.mxu0 %v212
    %237 = vmatprep.subr.mxu0 0.0
    %238 = vmatpush1.msra.mxu0 %v213
    %239 = vmatprep.subr.mxu0 0.0
    %240 = vmatpush1.msra.mxu0 %v214
    %241 = vmatprep.subr.mxu0 0.0
    %242 = vmatpush1.msra.mxu0 %v215
    %243 = vmatprep.subr.mxu0 0.0
    %244 = vmatpush1.msra.mxu0 %v216
    %245 = vmatprep.subr.mxu0 0.0
    %246 = vmatpush1.msra.mxu0 %v217
    %247 = vmatprep.subr.mxu0 0.0
    %248 = vmatpush1.msra.mxu0 %v218
    %249 = vmatprep.subr.mxu0 0.0
    %250 = vmatpush1.msra.mxu0 %v219
    %251 = vmatprep.subr.mxu0 0.0
    %252 = vmatpush1.msra.mxu0 %v220
    %253 = vmatprep.subr.mxu0 0.0
    %254 = vmatpush1.msra.mxu0 %v221
    %255 = vmatprep.subr.mxu0 0.0
    %256 = vmatpush1.msra.mxu0 %v222
    %257 = vmatprep.subr.mxu0 0.0
    %258 = vmatpush1.msra.mxu0 %v223
    %259 = vmatprep.subr.mxu0 0.0
    %260 = vmatpush1.msra.mxu0 %v224
    %261 = vmatprep.subr.mxu0 0.0
    %262 = vmatpush1.msra.mxu0 %v225
    %263 = vmatprep.subr.mxu0 0.0
    %264 = vmatpush1.msra.mxu0 %v226
    %265 = vmatprep.subr.mxu0 0.0
    %266 = vmatpush1.msra.mxu0 %v227
    %267 = vmatprep.subr.mxu0 0.0
    %268 = vmatpush1.msra.mxu0 0.0
    %269 = vmatprep.subr.mxu0 0.0
    %270 = vmatpush1.msra.mxu0 0.0
    %271 = vmatprep.subr.mxu0 0.0
    %272 = vmatpush1.msra.mxu0 0.0
    %273 = vmatprep.subr.mxu0 0.0
    %274 = vmatpush1.msra.mxu0 0.0
    %275 = vmatprep.subr.mxu0 0.0
    %276 = vmatpush1.msra.mxu0 0.0
    %277 = vmatprep.subr.mxu0 0.0
    %278 = vmatpush1.msra.mxu0 0.0
    %279 = vmatprep.subr.mxu0 0.0
    %280 = vmatpush1.msra.mxu0 0.0
    %281 = vmatprep.subr.mxu0 0.0
    %282 = vmatpush1.msra.mxu0 0.0
    %283 = vmatprep.subr.mxu0 0.0
    %284 = vmatpush1.msra.mxu0 0.0
    %285 = vmatprep.subr.mxu0 0.0
    %286 = vmatpush1.msra.mxu0 0.0
    %287 = vmatprep.subr.mxu0 0.0
    %288 = vmatpush1.msra.mxu0 0.0
    %289 = vmatprep.subr.mxu0 0.0
    %290 = vmatpush1.msra.mxu0 0.0
    %291 = vmatprep.subr.mxu0 0.0
    %292 = vmatpush1.msra.mxu0 0.0
    %293 = vmatprep.subr.mxu0 0.0
    %294 = vmatpush1.msra.mxu0 0.0
    %295 = vmatprep.subr.mxu0 0.0
    %296 = vmatpush1.msra.mxu0 0.0
    %297 = vmatprep.subr.mxu0 0.0
    %298 = vmatpush1.msra.mxu0 0.0
    %299 = vmatprep.mubr.f32.mxu0 0.0
    %300 = vmatmul.mubr.f32.gmra.mrb[0].mxu0 %v206
    %v301 = vpop.f32.mrb[0].mxu0
    %v302 = vadd.f32 %v233, %v301
    %v303 = vpop.f32.mrb[0].mxu0
    %304 = vmatprep.mubr.f32.mxu0 0.0
    %305 = vmatmul.mubr.f32.gmra.mrb[0].mxu0 %v207
    %v306 = vpop.f32.mrb[0].mxu0
    %v307 = vadd.f32 %v233, %v306
    %v308 = vpop.f32.mrb[0].mxu0
    %309 = vmatprep.mubr.f32.mxu0 0.0
    %310 = vmatmul.mubr.f32.gmra.mrb[0].mxu0 %v208
    %v311 = vpop.f32.mrb[0].mxu0
    %v312 = vadd.f32 %v233, %v311
    %v313 = vpop.f32.mrb[0].mxu0
    %314 = vmatprep.mubr.f32.mxu0 0.0
    %315 = vmatmul.mubr.f32.gmra.mrb[0].mxu0 %v209
    %v316 = vpop.f32.mrb[0].mxu0
    %v317 = vadd.f32 %v233, %v316
    %v318 = vpop.f32.mrb[0].mxu0
    %319 = vmatprep.mubr.f32.mxu0 0.0
    %320 = vmatmul.mubr.f32.gmra.mrb[0].mxu0 %v210
    %v321 = vpop.f32.mrb[0].mxu0
    %v322 = vadd.f32 %v233, %v321
    %v323 = vpop.f32.mrb[0].mxu0
    %324 = vmatprep.mubr.f32.mxu0 0.0
    %325 = vmatmul.mubr.f32.gmra.mrb[0].mxu0 %v211
    %v326 = vpop.f32.mrb[0].mxu0
    %v327 = vadd.f32 %v233, %v326
    %v328 = vpop.f32.mrb[0].mxu0
    %329 = vdwg.mxu0
    %v330 = vmax.f32 %v302, 0.0
    %v331 = vmax.f32 %v307, 0.0
    %v332 = vmax.f32 %v312, 0.0
    %v333 = vmax.f32 %v317, 0.0
    %v334 = vmax.f32 %v322, 0.0
    %v335 = vmax.f32 %v327, 0.0
    %v336 = vld [vmem:[#allocation8] sm:$0xff]
    %v337 = vld [vmem:[#allocation8 + $0x8] sm:$0xff]
    %v338 = vld [vmem:[#allocation8 + $0x10] sm:$0xff]
    %v339 = vld [vmem:[#allocation8 + $0x18] sm:$0xff]
    %v340 = vld [vmem:[#allocation8 + $0x20] sm:$0xff]
    %v341 = vld [vmem:[#allocation8 + $0x28] sm:$0xff]
    %v342 = vld [vmem:[#allocation8 + $0x30] sm:$0xff]
    %v343 = vld [vmem:[#allocation8 + $0x38] sm:$0xff]
    %v344 = vld [vmem:[#allocation8 + $0x40] sm:$0xff]
    %v345 = vld [vmem:[#allocation8 + $0x48] sm:$0xff]
    %v346 = vld [vmem:[#allocation8 + $0x50] sm:$0xff]
    %v347 = vld [vmem:[#allocation8 + $0x58] sm:$0xff]
    %v348 = vld [vmem:[#allocation8 + $0x60] sm:$0xff]
    %v349 = vld [vmem:[#allocation8 + $0x68] sm:$0xff]
    %v350 = vld [vmem:[#allocation8 + $0x70] sm:$0xff]
    %v351 = vld [vmem:[#allocation8 + $0x78] sm:$0xff]
    %v352 = vld [vmem:[%s6] sm:$0x1]
    %v354 = vlaneseq
    %v355 = vshrl.u32 %v354, 7
    %v356 = vsub.s32 0, %v355
    %v357 = vrot.slane %v352, %v356
    %359 = vmatprep.subr.mxu0 0.0
    %360 = vmatpush1.msra.mxu0 %v336
    %361 = vmatprep.subr.mxu0 0.0
    %362 = vmatpush1.msra.mxu0 %v337
    %363 = vmatprep.subr.mxu0 0.0
    %364 = vmatpush1.msra.mxu0 %v338
    %365 = vmatprep.subr.mxu0 0.0
    %366 = vmatpush1.msra.mxu0 %v339
    %367 = vmatprep.subr.mxu0 0.0
    %368 = vmatpush1.msra.mxu0 %v340
    %369 = vmatprep.subr.mxu0 0.0
    %370 = vmatpush1.msra.mxu0 %v341
    %371 = vmatprep.subr.mxu0 0.0
    %372 = vmatpush1.msra.mxu0 %v342
    %373 = vmatprep.subr.mxu0 0.0
    %374 = vmatpush1.msra.mxu0 %v343
    %375 = vmatprep.subr.mxu0 0.0
    %376 = vmatpush1.msra.mxu0 %v344
    %377 = vmatprep.subr.mxu0 0.0
    %378 = vmatpush1.msra.mxu0 %v345
    %379 = vmatprep.subr.mxu0 0.0
    %380 = vmatpush1.msra.mxu0 %v346
    %381 = vmatprep.subr.mxu0 0.0
    %382 = vmatpush1.msra.mxu0 %v347
    %383 = vmatprep.subr.mxu0 0.0
    %384 = vmatpush1.msra.mxu0 %v348
    %385 = vmatprep.subr.mxu0 0.0
    %386 = vmatpush1.msra.mxu0 %v349
    %387 = vmatprep.subr.mxu0 0.0
    %388 = vmatpush1.msra.mxu0 %v350
    %389 = vmatprep.subr.mxu0 0.0
    %390 = vmatpush1.msra.mxu0 %v351
    %391 = vmatprep.subr.mxu0 0.0
    %392 = vmatpush1.msra.mxu0 0.0
    %393 = vmatprep.subr.mxu0 0.0
    %394 = vmatpush1.msra.mxu0 0.0
    %395 = vmatprep.subr.mxu0 0.0
    %396 = vmatpush1.msra.mxu0 0.0
    %397 = vmatprep.subr.mxu0 0.0
    %398 = vmatpush1.msra.mxu0 0.0
    %399 = vmatprep.subr.mxu0 0.0
    %400 = vmatpush1.msra.mxu0 0.0
    %401 = vmatprep.subr.mxu0 0.0
    %402 = vmatpush1.msra.mxu0 0.0
    %403 = vmatprep.subr.mxu0 0.0
    %404 = vmatpush1.msra.mxu0 0.0
    %405 = vmatprep.subr.mxu0 0.0
    %406 = vmatpush1.msra.mxu0 0.0
    %407 = vmatprep.subr.mxu0 0.0
    %408 = vmatpush1.msra.mxu0 0.0
    %409 = vmatprep.subr.mxu0 0.0
    %410 = vmatpush1.msra.mxu0 0.0
    %411 = vmatprep.subr.mxu0 0.0
    %412 = vmatpush1.msra.mxu0 0.0
    %413 = vmatprep.subr.mxu0 0.0
    %414 = vmatpush1.msra.mxu0 0.0
    %415 = vmatprep.subr.mxu0 0.0
    %416 = vmatpush1.msra.mxu0 0.0
    %417 = vmatprep.subr.mxu0 0.0
    %418 = vmatpush1.msra.mxu0 0.0
    %419 = vmatprep.subr.mxu0 0.0
    %420 = vmatpush1.msra.mxu0 0.0
    %421 = vmatprep.subr.mxu0 0.0
    %422 = vmatpush1.msra.mxu0 0.0
    %423 = vmatprep.mubr.f32.mxu0 0.0
    %424 = vmatmul.mubr.f32.gmra.mrb[0].mxu0 %v330
    %v425 = vpop.f32.mrb[0].mxu0
    %v426 = vadd.f32 %v357, %v425
    %v427 = vpop.f32.mrb[0].mxu0
    %428 = vmatprep.mubr.f32.mxu0 0.0
    %429 = vmatmul.mubr.f32.gmra.mrb[0].mxu0 %v331
    %v430 = vpop.f32.mrb[0].mxu0
    %v431 = vadd.f32 %v357, %v430
    %v432 = vpop.f32.mrb[0].mxu0
    %433 = vmatprep.mubr.f32.mxu0 0.0
    %434 = vmatmul.mubr.f32.gmra.mrb[0].mxu0 %v332
    %v435 = vpop.f32.mrb[0].mxu0
    %v436 = vadd.f32 %v357, %v435
    %v437 = vpop.f32.mrb[0].mxu0
    %438 = vmatprep.mubr.f32.mxu0 0.0
    %439 = vmatmul.mubr.f32.gmra.mrb[0].mxu0 %v333
    %v440 = vpop.f32.mrb[0].mxu0
    %v441 = vadd.f32 %v357, %v440
    %v442 = vpop.f32.mrb[0].mxu0
    %443 = vmatprep.mubr.f32.mxu0 0.0
    %444 = vmatmul.mubr.f32.gmra.mrb[0].mxu0 %v334
    %v445 = vpop.f32.mrb[0].mxu0
    %v446 = vadd.f32 %v357, %v445
    %v447 = vpop.f32.mrb[0].mxu0
    %448 = vmatprep.mubr.f32.mxu0 0.0
    %449 = vmatmul.mubr.f32.gmra.mrb[0].mxu0 %v335
    %v450 = vpop.f32.mrb[0].mxu0
    %v451 = vadd.f32 %v357, %v450
    %v452 = vpop.f32.mrb[0].mxu0
    %453 = vdwg.mxu0
    %454 = vst [vmem:[#allocation10] sm:$0xff] %v426
    %455 = vst [vmem:[#allocation10 + $0x8] sm:$0xff] %v431
    %456 = vst [vmem:[#allocation10 + $0x10] sm:$0xff] %v436
    %457 = vst [vmem:[#allocation10 + $0x18] sm:$0xff] %v441
    %458 = vst [vmem:[#allocation10 + $0x20] sm:$0xff] %v446
    %459 = vst [vmem:[#allocation10 + $0x28] sm:$0xff] %v451
    // Predicated region
    $region46: #{tpu_custom_call.1} parent=1 // pred_check
      _
    $region47: #{tpu_custom_call.1} parent=1 // pred_check_branch
      %461 = sbr.rel (0) target = $region49
    $region48: #{tpu_custom_call.1} parent=1 // pred_region
      %s463 = ssub.s32 768, 768
      %464 = vsyncadd [#allocation4], %s463
      %s465 = sshll.u32 [#allocation10], 4
      %s466 = int_to_ptr.vmem [resolvable:$true] %s465
      %471 = dma.vmem_to_hbm [thread:$0]  %s466, 768, %s7, [#allocation4], 128, 128, 8
    $region49: #{tpu_custom_call.1} parent=1 // pred_fallthru
      _
    // Predicated region
    $region50: #{tpu_custom_call.1} parent=1 // pred_check
      _
    $region51: #{tpu_custom_call.1} parent=1 // pred_check_branch
      %473 = sbr.rel (0) target = $region53
    $region52: #{tpu_custom_call.1} parent=1 // pred_region
      %474 = dma.done [#allocation4], 768
    $region53: #{tpu_custom_call.1} parent=1 // pred_fallthru
      _
    %475 = vsyncpa [#allocation3], 1
    %476 = vsyncpa [#allocation6], 1
    %477 = vsyncpa [#allocation9], 1
    %478 = vsyncpa [#allocation4], 1

// kernel: tpu_custom_call.1
$region0: #{tpu_custom_call.1}
  #allocation0 [shape = 'u32[]', space=smem, size = 0x4, offset = 0x4, fixed_abs, tag = 'smem constant byte address 0x4 - core index']
  #allocation1 [shape = 'u32[144,128]{1,0:T(1,128)}', space=vmem, size = 0x12000, scoped, tag = 'internal scratch']
  %s0 = inlined_call_operand.hbm [shape: f32[48,128], index: 0, kind: input, shape index: {}]
  %s1 = inlined_call_operand.hbm [shape: f32[128,128], index: 1, kind: input, shape index: {}]
  %s2 = inlined_call_operand.vmem [shape: f32[1,128], index: 2, kind: input, shape index: {}]
  %s3 = inlined_call_operand.hbm [shape: f32[128,128], index: 3, kind: input, shape index: {}]
  %s4 = inlined_call_operand.vmem [shape: f32[1,128], index: 4, kind: input, shape index: {}]
  %s5 = inlined_call_operand.hbm [shape: f32[128,128], index: 5, kind: input, shape index: {}]
  %s6 = inlined_call_operand.vmem [shape: f32[1,128], index: 6, kind: input, shape index: {}]
  %s7 = inlined_call_operand.hbm [shape: f32[48,128], index: 7, kind: output, shape index: {}]
  %s8 = sld [smem:[#allocation0]]
  $region54: #{tpu_custom_call.1} parent=0
    _
  %s10 = ssub.s32 1, %s8
  %s11 = scalar_select 0, %s10, %s8
  $region1: #{tpu_custom_call.1} parent=0
    #allocation2 [shape = 'u8[24576]{0}', space=vmem, size = 0x6000, scoped, tag = 'input window, operand 0, single buffered']
    #allocation3 [shape = 's32[1]{0}', space=sflag, size = 0x4, scoped, tag = 'scoped memory for tpu_custom_call.1']
    #allocation4 [shape = 's32[1]{0}', space=sflag, size = 0x4, scoped, tag = 'scoped memory for tpu_custom_call.1']
    #allocation5 [shape = 'u8[65536]{0}', space=vmem, size = 0x10000, scoped, tag = 'input window, operand 1, single buffered']
    #allocation6 [shape = 's32[1]{0}', space=sflag, size = 0x4, scoped, tag = 'scoped memory for tpu_custom_call.1']
    #allocation7 [shape = 'u8[65536]{0}', space=vmem, size = 0x10000, scoped, tag = 'input window, operand 3, single buffered']
    #allocation8 [shape = 'u8[65536]{0}', space=vmem, size = 0x10000, scoped, tag = 'input window, operand 5, single buffered']
    #allocation9 [shape = 's32[1]{0}', space=sflag, size = 0x4, scoped, tag = 'scoped memory for tpu_custom_call.1']
    #allocation10 [shape = 'u8[24576]{0}', space=vmem, size = 0x6000, scoped, tag = 'output window, operand 0, single buffered']
    %12 = vsyncpa [#allocation3], 0
    %13 = vsyncpa [#allocation6], 0
    %14 = vsyncpa [#allocation9], 0
    %15 = vsyncpa [#allocation4], 0
    // Predicated region
    $region2: #{tpu_custom_call.1} parent=1 // pred_check
      _
    $region3: #{tpu_custom_call.1} parent=1 // pred_check_branch
      %17 = sbr.rel (0) target = $region5
    $region4: #{tpu_custom_call.1} parent=1 // pred_region
      %s19 = ssub.s32 768, 768
      %20 = vsyncadd [#allocation3], %s19
      %s21 = sshll.u32 [#allocation2], 4
      %s22 = int_to_ptr.vmem [resolvable:$true] %s21
      %27 = dma.hbm_to_vmem [thread:$0]  %s0, 768, %s22, [#allocation3], 128, 128, 8
    $region5: #{tpu_custom_call.1} parent=1 // pred_fallthru
      _
    // Predicated region
    $region6: #{tpu_custom_call.1} parent=1 // pred_check
      _
    $region7: #{tpu_custom_call.1} parent=1 // pred_check_branch
      %29 = sbr.rel (0) target = $region9
    $region8: #{tpu_custom_call.1} parent=1 // pred_region
      %s31 = ssub.s32 2048, 2048
      %32 = vsyncadd [#allocation6], %s31
      %s33 = sshll.u32 [#allocation5], 4
      %s34 = int_to_ptr.vmem [resolvable:$true] %s33
      %39 = dma.hbm_to_vmem [thread:$0]  %s1, 2048, %s34, [#allocation6], 128, 128, 8
    $region9: #{tpu_custom_call.1} parent=1 // pred_fallthru
      _
    // Predicated region
    $region10: #{tpu_custom_call.1} parent=1 // pred_check
      _
    $region11: #{tpu_custom_call.1} parent=1 // pred_check_branch
      %41 = sbr.rel (0) target = $region13
    $region12: #{tpu_custom_call.1} parent=1 // pred_region
      _
    $region13: #{tpu_custom_call.1} parent=1 // pred_fallthru
      _
    // Predicated region
    $region14: #{tpu_custom_call.1} parent=1 // pred_check
      _
    $region15: #{tpu_custom_call.1} parent=1 // pred_check_branch
      %43 = sbr.rel (0) target = $region17
    $region16: #{tpu_custom_call.1} parent=1 // pred_region
      %s45 = ssub.s32 2048, 2048
      %46 = vsyncadd [#allocation6], %s45
      %s47 = sshll.u32 [#allocation7], 4
      %s48 = int_to_ptr.vmem [resolvable:$true] %s47
      %53 = dma.hbm_to_vmem [thread:$0]  %s3, 2048, %s48, [#allocation6], 128, 128, 8
    $region17: #{tpu_custom_call.1} parent=1 // pred_fallthru
      _
    // Predicated region
    $region18: #{tpu_custom_call.1} parent=1 // pred_check
      _
    $region19: #{tpu_custom_call.1} parent=1 // pred_check_branch
      %55 = sbr.rel (0) target = $region21
    $region20: #{tpu_custom_call.1} parent=1 // pred_region
      _
    $region21: #{tpu_custom_call.1} parent=1 // pred_fallthru
      _
    // Predicated region
    $region22: #{tpu_custom_call.1} parent=1 // pred_check
      _
    $region23: #{tpu_custom_call.1} parent=1 // pred_check_branch
      %57 = sbr.rel (0) target = $region25
    $region24: #{tpu_custom_call.1} parent=1 // pred_region
      %s59 = ssub.s32 2048, 2048
      %60 = vsyncadd [#allocation9], %s59
      %s61 = sshll.u32 [#allocation8], 4
      %s62 = int_to_ptr.vmem [resolvable:$true] %s61
      %67 = dma.hbm_to_vmem [thread:$0]  %s5, 2048, %s62, [#allocation9], 128, 128, 8
    $region25: #{tpu_custom_call.1} parent=1 // pred_fallthru
      _
    // Predicated region
    $region26: #{tpu_custom_call.1} parent=1 // pred_check
      _
    $region27: #{tpu_custom_call.1} parent=1 // pred_check_branch
      %69 = sbr.rel (0) target = $region29
    $region28: #{tpu_custom_call.1} parent=1 // pred_region
      _
    $region29: #{tpu_custom_call.1} parent=1 // pred_fallthru
      _
    // Predicated region
    $region30: #{tpu_custom_call.1} parent=1 // pred_check
      _
    $region31: #{tpu_custom_call.1} parent=1 // pred_check_branch
      %71 = sbr.rel (0) target = $region33
    $region32: #{tpu_custom_call.1} parent=1 // pred_region
      %72 = dma.done [#allocation3], 768
    $region33: #{tpu_custom_call.1} parent=1 // pred_fallthru
      _
    // Predicated region
    $region34: #{tpu_custom_call.1} parent=1 // pred_check
      _
    $region35: #{tpu_custom_call.1} parent=1 // pred_check_branch
      %74 = sbr.rel (0) target = $region37
    $region36: #{tpu_custom_call.1} parent=1 // pred_region
      %75 = dma.done [#allocation6], 2048
    $region37: #{tpu_custom_call.1} parent=1 // pred_fallthru
      _
    // Predicated region
    $region38: #{tpu_custom_call.1} parent=1 // pred_check
      _
    $region39: #{tpu_custom_call.1} parent=1 // pred_check_branch
      %77 = sbr.rel (0) target = $region41
    $region40: #{tpu_custom_call.1} parent=1 // pred_region
      %78 = dma.done [#allocation6], 2048
    $region41: #{tpu_custom_call.1} parent=1 // pred_fallthru
      _
    // Predicated region
    $region42: #{tpu_custom_call.1} parent=1 // pred_check
      _
    $region43: #{tpu_custom_call.1} parent=1 // pred_check_branch
      %80 = sbr.rel (0) target = $region45
    $region44: #{tpu_custom_call.1} parent=1 // pred_region
      %81 = dma.done [#allocation9], 2048
    $region45: #{tpu_custom_call.1} parent=1 // pred_fallthru
      _
    %v82 = vld [vmem:[#allocation2] sm:$0xff]
    %v83 = vld [vmem:[#allocation2 + $0x8] sm:$0xff]
    %v84 = vld [vmem:[#allocation2 + $0x10] sm:$0xff]
    %v85 = vld [vmem:[#allocation2 + $0x18] sm:$0xff]
    %v86 = vld [vmem:[#allocation2 + $0x20] sm:$0xff]
    %v87 = vld [vmem:[#allocation2 + $0x28] sm:$0xff]
    %v88 = vld [vmem:[#allocation5] sm:$0xff]
    %v89 = vld [vmem:[#allocation5 + $0x8] sm:$0xff]
    %v90 = vld [vmem:[#allocation5 + $0x10] sm:$0xff]
    %v91 = vld [vmem:[#allocation5 + $0x18] sm:$0xff]
    %v92 = vld [vmem:[#allocation5 + $0x20] sm:$0xff]
    %v93 = vld [vmem:[#allocation5 + $0x28] sm:$0xff]
    %v94 = vld [vmem:[#allocation5 + $0x30] sm:$0xff]
    %v95 = vld [vmem:[#allocation5 + $0x38] sm:$0xff]
    %v96 = vld [vmem:[#allocation5 + $0x40] sm:$0xff]
    %v97 = vld [vmem:[#allocation5 + $0x48] sm:$0xff]
    %v98 = vld [vmem:[#allocation5 + $0x50] sm:$0xff]
    %v99 = vld [vmem:[#allocation5 + $0x58] sm:$0xff]
    %v100 = vld [vmem:[#allocation5 + $0x60] sm:$0xff]
    %v101 = vld [vmem:[#allocation5 + $0x68] sm:$0xff]
    %v102 = vld [vmem:[#allocation5 + $0x70] sm:$0xff]
    %v103 = vld [vmem:[#allocation5 + $0x78] sm:$0xff]
    %v104 = vld [vmem:[%s2] sm:$0x1]
    %v106 = vlaneseq
    %v107 = vshrl.u32 %v106, 7
    %v108 = vsub.s32 0, %v107
    %v109 = vrot.slane %v104, %v108
    %111 = vmatprep.subr.mxu0 0.0
    %112 = vmatpush1.msra.mxu0 %v88
    %113 = vmatprep.subr.mxu0 0.0
    %114 = vmatpush1.msra.mxu0 %v89
    %115 = vmatprep.subr.mxu0 0.0
    %116 = vmatpush1.msra.mxu0 %v90
    %117 = vmatprep.subr.mxu0 0.0
    %118 = vmatpush1.msra.mxu0 %v91
    %119 = vmatprep.subr.mxu0 0.0
    %120 = vmatpush1.msra.mxu0 %v92
    %121 = vmatprep.subr.mxu0 0.0
    %122 = vmatpush1.msra.mxu0 %v93
    %123 = vmatprep.subr.mxu0 0.0
    %124 = vmatpush1.msra.mxu0 %v94
    %125 = vmatprep.subr.mxu0 0.0
    %126 = vmatpush1.msra.mxu0 %v95
    %127 = vmatprep.subr.mxu0 0.0
    %128 = vmatpush1.msra.mxu0 %v96
    %129 = vmatprep.subr.mxu0 0.0
    %130 = vmatpush1.msra.mxu0 %v97
    %131 = vmatprep.subr.mxu0 0.0
    %132 = vmatpush1.msra.mxu0 %v98
    %133 = vmatprep.subr.mxu0 0.0
    %134 = vmatpush1.msra.mxu0 %v99
    %135 = vmatprep.subr.mxu0 0.0
    %136 = vmatpush1.msra.mxu0 %v100
    %137 = vmatprep.subr.mxu0 0.0
    %138 = vmatpush1.msra.mxu0 %v101
    %139 = vmatprep.subr.mxu0 0.0
    %140 = vmatpush1.msra.mxu0 %v102
    %141 = vmatprep.subr.mxu0 0.0
    %142 = vmatpush1.msra.mxu0 %v103
    %143 = vmatprep.subr.mxu0 0.0
    %144 = vmatpush1.msra.mxu0 0.0
    %145 = vmatprep.subr.mxu0 0.0
    %146 = vmatpush1.msra.mxu0 0.0
    %147 = vmatprep.subr.mxu0 0.0
    %148 = vmatpush1.msra.mxu0 0.0
    %149 = vmatprep.subr.mxu0 0.0
    %150 = vmatpush1.msra.mxu0 0.0
    %151 = vmatprep.subr.mxu0 0.0
    %152 = vmatpush1.msra.mxu0 0.0
    %153 = vmatprep.subr.mxu0 0.0
    %154 = vmatpush1.msra.mxu0 0.0
    %155 = vmatprep.subr.mxu0 0.0
    %156 = vmatpush1.msra.mxu0 0.0
    %157 = vmatprep.subr.mxu0 0.0
    %158 = vmatpush1.msra.mxu0 0.0
    %159 = vmatprep.subr.mxu0 0.0
    %160 = vmatpush1.msra.mxu0 0.0
    %161 = vmatprep.subr.mxu0 0.0
    %162 = vmatpush1.msra.mxu0 0.0
    %163 = vmatprep.subr.mxu0 0.0
    %164 = vmatpush1.msra.mxu0 0.0
    %165 = vmatprep.subr.mxu0 0.0
    %166 = vmatpush1.msra.mxu0 0.0
    %167 = vmatprep.subr.mxu0 0.0
    %168 = vmatpush1.msra.mxu0 0.0
    %169 = vmatprep.subr.mxu0 0.0
    %170 = vmatpush1.msra.mxu0 0.0
    %171 = vmatprep.subr.mxu0 0.0
    %172 = vmatpush1.msra.mxu0 0.0
    %173 = vmatprep.subr.mxu0 0.0
    %174 = vmatpush1.msra.mxu0 0.0
    %175 = vmatprep.mubr.f32.mxu0 0.0
    %176 = vmatmul.mubr.f32.gmra.mrb[0].mxu0 %v82
    %v177 = vpop.f32.mrb[0].mxu0
    %v178 = vadd.f32 %v109, %v177
    %v179 = vpop.f32.mrb[0].mxu0
    %180 = vmatprep.mubr.f32.mxu0 0.0
    %181 = vmatmul.mubr.f32.gmra.mrb[0].mxu0 %v83
    %v182 = vpop.f32.mrb[0].mxu0
    %v183 = vadd.f32 %v109, %v182
    %v184 = vpop.f32.mrb[0].mxu0
    %185 = vmatprep.mubr.f32.mxu0 0.0
    %186 = vmatmul.mubr.f32.gmra.mrb[0].mxu0 %v84
    %v187 = vpop.f32.mrb[0].mxu0
    %v188 = vadd.f32 %v109, %v187
    %v189 = vpop.f32.mrb[0].mxu0
    %190 = vmatprep.mubr.f32.mxu0 0.0
    %191 = vmatmul.mubr.f32.gmra.mrb[0].mxu0 %v85
    %v192 = vpop.f32.mrb[0].mxu0
    %v193 = vadd.f32 %v109, %v192
    %v194 = vpop.f32.mrb[0].mxu0
    %195 = vmatprep.mubr.f32.mxu0 0.0
    %196 = vmatmul.mubr.f32.gmra.mrb[0].mxu0 %v86
    %v197 = vpop.f32.mrb[0].mxu0
    %v198 = vadd.f32 %v109, %v197
    %v199 = vpop.f32.mrb[0].mxu0
    %200 = vmatprep.mubr.f32.mxu0 0.0
    %201 = vmatmul.mubr.f32.gmra.mrb[0].mxu0 %v87
    %v202 = vpop.f32.mrb[0].mxu0
    %v203 = vadd.f32 %v109, %v202
    %v204 = vpop.f32.mrb[0].mxu0
    %205 = vdwg.mxu0
    %v206 = vmax.f32 %v178, 0.0
    %v207 = vmax.f32 %v183, 0.0
    %v208 = vmax.f32 %v188, 0.0
    %v209 = vmax.f32 %v193, 0.0
    %v210 = vmax.f32 %v198, 0.0
    %v211 = vmax.f32 %v203, 0.0
    %v212 = vld [vmem:[#allocation7] sm:$0xff]
    %v213 = vld [vmem:[#allocation7 + $0x8] sm:$0xff]
    %v214 = vld [vmem:[#allocation7 + $0x10] sm:$0xff]
    %v215 = vld [vmem:[#allocation7 + $0x18] sm:$0xff]
    %v216 = vld [vmem:[#allocation7 + $0x20] sm:$0xff]
    %v217 = vld [vmem:[#allocation7 + $0x28] sm:$0xff]
    %v218 = vld [vmem:[#allocation7 + $0x30] sm:$0xff]
    %v219 = vld [vmem:[#allocation7 + $0x38] sm:$0xff]
    %v220 = vld [vmem:[#allocation7 + $0x40] sm:$0xff]
    %v221 = vld [vmem:[#allocation7 + $0x48] sm:$0xff]
    %v222 = vld [vmem:[#allocation7 + $0x50] sm:$0xff]
    %v223 = vld [vmem:[#allocation7 + $0x58] sm:$0xff]
    %v224 = vld [vmem:[#allocation7 + $0x60] sm:$0xff]
    %v225 = vld [vmem:[#allocation7 + $0x68] sm:$0xff]
    %v226 = vld [vmem:[#allocation7 + $0x70] sm:$0xff]
    %v227 = vld [vmem:[#allocation7 + $0x78] sm:$0xff]
    %v228 = vld [vmem:[%s4] sm:$0x1]
    %v230 = vlaneseq
    %v231 = vshrl.u32 %v230, 7
    %v232 = vsub.s32 0, %v231
    %v233 = vrot.slane %v228, %v232
    %235 = vmatprep.subr.mxu0 0.0
    %236 = vmatpush1.msra.mxu0 %v212
    %237 = vmatprep.subr.mxu0 0.0
    %238 = vmatpush1.msra.mxu0 %v213
    %239 = vmatprep.subr.mxu0 0.0
    %240 = vmatpush1.msra.mxu0 %v214
    %241 = vmatprep.subr.mxu0 0.0
    %242 = vmatpush1.msra.mxu0 %v215
    %243 = vmatprep.subr.mxu0 0.0
    %244 = vmatpush1.msra.mxu0 %v216
    %245 = vmatprep.subr.mxu0 0.0
    %246 = vmatpush1.msra.mxu0 %v217
    %247 = vmatprep.subr.mxu0 0.0
    %248 = vmatpush1.msra.mxu0 %v218
    %249 = vmatprep.subr.mxu0 0.0
    %250 = vmatpush1.msra.mxu0 %v219
    %251 = vmatprep.subr.mxu0 0.0
    %252 = vmatpush1.msra.mxu0 %v220
    %253 = vmatprep.subr.mxu0 0.0
    %254 = vmatpush1.msra.mxu0 %v221
    %255 = vmatprep.subr.mxu0 0.0
    %256 = vmatpush1.msra.mxu0 %v222
    %257 = vmatprep.subr.mxu0 0.0
    %258 = vmatpush1.msra.mxu0 %v223
    %259 = vmatprep.subr.mxu0 0.0
    %260 = vmatpush1.msra.mxu0 %v224
    %261 = vmatprep.subr.mxu0 0.0
    %262 = vmatpush1.msra.mxu0 %v225
    %263 = vmatprep.subr.mxu0 0.0
    %264 = vmatpush1.msra.mxu0 %v226
    %265 = vmatprep.subr.mxu0 0.0
    %266 = vmatpush1.msra.mxu0 %v227
    %267 = vmatprep.subr.mxu0 0.0
    %268 = vmatpush1.msra.mxu0 0.0
    %269 = vmatprep.subr.mxu0 0.0
    %270 = vmatpush1.msra.mxu0 0.0
    %271 = vmatprep.subr.mxu0 0.0
    %272 = vmatpush1.msra.mxu0 0.0
    %273 = vmatprep.subr.mxu0 0.0
    %274 = vmatpush1.msra.mxu0 0.0
    %275 = vmatprep.subr.mxu0 0.0
    %276 = vmatpush1.msra.mxu0 0.0
    %277 = vmatprep.subr.mxu0 0.0
    %278 = vmatpush1.msra.mxu0 0.0
    %279 = vmatprep.subr.mxu0 0.0
    %280 = vmatpush1.msra.mxu0 0.0
    %281 = vmatprep.subr.mxu0 0.0
    %282 = vmatpush1.msra.mxu0 0.0
    %283 = vmatprep.subr.mxu0 0.0
    %284 = vmatpush1.msra.mxu0 0.0
    %285 = vmatprep.subr.mxu0 0.0
    %286 = vmatpush1.msra.mxu0 0.0
    %287 = vmatprep.subr.mxu0 0.0
    %288 = vmatpush1.msra.mxu0 0.0
    %289 = vmatprep.subr.mxu0 0.0
    %290 = vmatpush1.msra.mxu0 0.0
    %291 = vmatprep.subr.mxu0 0.0
    %292 = vmatpush1.msra.mxu0 0.0
    %293 = vmatprep.subr.mxu0 0.0
    %294 = vmatpush1.msra.mxu0 0.0
    %295 = vmatprep.subr.mxu0 0.0
    %296 = vmatpush1.msra.mxu0 0.0
    %297 = vmatprep.subr.mxu0 0.0
    %298 = vmatpush1.msra.mxu0 0.0
    %299 = vmatprep.mubr.f32.mxu0 0.0
    %300 = vmatmul.mubr.f32.gmra.mrb[0].mxu0 %v206
    %v301 = vpop.f32.mrb[0].mxu0
    %v302 = vadd.f32 %v233, %v301
    %v303 = vpop.f32.mrb[0].mxu0
    %304 = vmatprep.mubr.f32.mxu0 0.0
    %305 = vmatmul.mubr.f32.gmra.mrb[0].mxu0 %v207
    %v306 = vpop.f32.mrb[0].mxu0
    %v307 = vadd.f32 %v233, %v306
    %v308 = vpop.f32.mrb[0].mxu0
    %309 = vmatprep.mubr.f32.mxu0 0.0
    %310 = vmatmul.mubr.f32.gmra.mrb[0].mxu0 %v208
    %v311 = vpop.f32.mrb[0].mxu0
    %v312 = vadd.f32 %v233, %v311
    %v313 = vpop.f32.mrb[0].mxu0
    %314 = vmatprep.mubr.f32.mxu0 0.0
    %315 = vmatmul.mubr.f32.gmra.mrb[0].mxu0 %v209
    %v316 = vpop.f32.mrb[0].mxu0
    %v317 = vadd.f32 %v233, %v316
    %v318 = vpop.f32.mrb[0].mxu0
    %319 = vmatprep.mubr.f32.mxu0 0.0
    %320 = vmatmul.mubr.f32.gmra.mrb[0].mxu0 %v210
    %v321 = vpop.f32.mrb[0].mxu0
    %v322 = vadd.f32 %v233, %v321
    %v323 = vpop.f32.mrb[0].mxu0
    %324 = vmatprep.mubr.f32.mxu0 0.0
    %325 = vmatmul.mubr.f32.gmra.mrb[0].mxu0 %v211
    %v326 = vpop.f32.mrb[0].mxu0
    %v327 = vadd.f32 %v233, %v326
    %v328 = vpop.f32.mrb[0].mxu0
    %329 = vdwg.mxu0
    %v330 = vmax.f32 %v302, 0.0
    %v331 = vmax.f32 %v307, 0.0
    %v332 = vmax.f32 %v312, 0.0
    %v333 = vmax.f32 %v317, 0.0
    %v334 = vmax.f32 %v322, 0.0
    %v335 = vmax.f32 %v327, 0.0
    %v336 = vld [vmem:[#allocation8] sm:$0xff]
    %v337 = vld [vmem:[#allocation8 + $0x8] sm:$0xff]
    %v338 = vld [vmem:[#allocation8 + $0x10] sm:$0xff]
    %v339 = vld [vmem:[#allocation8 + $0x18] sm:$0xff]
    %v340 = vld [vmem:[#allocation8 + $0x20] sm:$0xff]
    %v341 = vld [vmem:[#allocation8 + $0x28] sm:$0xff]
    %v342 = vld [vmem:[#allocation8 + $0x30] sm:$0xff]
    %v343 = vld [vmem:[#allocation8 + $0x38] sm:$0xff]
    %v344 = vld [vmem:[#allocation8 + $0x40] sm:$0xff]
    %v345 = vld [vmem:[#allocation8 + $0x48] sm:$0xff]
    %v346 = vld [vmem:[#allocation8 + $0x50] sm:$0xff]
    %v347 = vld [vmem:[#allocation8 + $0x58] sm:$0xff]
    %v348 = vld [vmem:[#allocation8 + $0x60] sm:$0xff]
    %v349 = vld [vmem:[#allocation8 + $0x68] sm:$0xff]
    %v350 = vld [vmem:[#allocation8 + $0x70] sm:$0xff]
    %v351 = vld [vmem:[#allocation8 + $0x78] sm:$0xff]
    %v352 = vld [vmem:[%s6] sm:$0x1]
    %v354 = vlaneseq
    %v355 = vshrl.u32 %v354, 7
    %v356 = vsub.s32 0, %v355
    %v357 = vrot.slane %v352, %v356
    %359 = vmatprep.subr.mxu0 0.0
    %360 = vmatpush1.msra.mxu0 %v336
    %361 = vmatprep.subr.mxu0 0.0
    %362 = vmatpush1.msra.mxu0 %v337
    %363 = vmatprep.subr.mxu0 0.0
    %364 = vmatpush1.msra.mxu0 %v338
    %365 = vmatprep.subr.mxu0 0.0
    %366 = vmatpush1.msra.mxu0 %v339
    %367 = vmatprep.subr.mxu0 0.0
    %368 = vmatpush1.msra.mxu0 %v340
    %369 = vmatprep.subr.mxu0 0.0
    %370 = vmatpush1.msra.mxu0 %v341
    %371 = vmatprep.subr.mxu0 0.0
    %372 = vmatpush1.msra.mxu0 %v342
    %373 = vmatprep.subr.mxu0 0.0
    %374 = vmatpush1.msra.mxu0 %v343
    %375 = vmatprep.subr.mxu0 0.0
    %376 = vmatpush1.msra.mxu0 %v344
    %377 = vmatprep.subr.mxu0 0.0
    %378 = vmatpush1.msra.mxu0 %v345
    %379 = vmatprep.subr.mxu0 0.0
    %380 = vmatpush1.msra.mxu0 %v346
    %381 = vmatprep.subr.mxu0 0.0
    %382 = vmatpush1.msra.mxu0 %v347
    %383 = vmatprep.subr.mxu0 0.0
    %384 = vmatpush1.msra.mxu0 %v348
    %385 = vmatprep.subr.mxu0 0.0
    %386 = vmatpush1.msra.mxu0 %v349
    %387 = vmatprep.subr.mxu0 0.0
    %388 = vmatpush1.msra.mxu0 %v350
    %389 = vmatprep.subr.mxu0 0.0
    %390 = vmatpush1.msra.mxu0 %v351
    %391 = vmatprep.subr.mxu0 0.0
    %392 = vmatpush1.msra.mxu0 0.0
    %393 = vmatprep.subr.mxu0 0.0
    %394 = vmatpush1.msra.mxu0 0.0
    %395 = vmatprep.subr.mxu0 0.0
    %396 = vmatpush1.msra.mxu0 0.0
    %397 = vmatprep.subr.mxu0 0.0
    %398 = vmatpush1.msra.mxu0 0.0
    %399 = vmatprep.subr.mxu0 0.0
    %400 = vmatpush1.msra.mxu0 0.0
    %401 = vmatprep.subr.mxu0 0.0
    %402 = vmatpush1.msra.mxu0 0.0
    %403 = vmatprep.subr.mxu0 0.0
    %404 = vmatpush1.msra.mxu0 0.0
    %405 = vmatprep.subr.mxu0 0.0
    %406 = vmatpush1.msra.mxu0 0.0
    %407 = vmatprep.subr.mxu0 0.0
    %408 = vmatpush1.msra.mxu0 0.0
    %409 = vmatprep.subr.mxu0 0.0
    %410 = vmatpush1.msra.mxu0 0.0
    %411 = vmatprep.subr.mxu0 0.0
    %412 = vmatpush1.msra.mxu0 0.0
    %413 = vmatprep.subr.mxu0 0.0
    %414 = vmatpush1.msra.mxu0 0.0
    %415 = vmatprep.subr.mxu0 0.0
    %416 = vmatpush1.msra.mxu0 0.0
    %417 = vmatprep.subr.mxu0 0.0
    %418 = vmatpush1.msra.mxu0 0.0
    %419 = vmatprep.subr.mxu0 0.0
    %420 = vmatpush1.msra.mxu0 0.0
    %421 = vmatprep.subr.mxu0 0.0
    %422 = vmatpush1.msra.mxu0 0.0
    %423 = vmatprep.mubr.f32.mxu0 0.0
    %424 = vmatmul.mubr.f32.gmra.mrb[0].mxu0 %v330
    %v425 = vpop.f32.mrb[0].mxu0
    %v426 = vadd.f32 %v357, %v425
    %v427 = vpop.f32.mrb[0].mxu0
    %428 = vmatprep.mubr.f32.mxu0 0.0
    %429 = vmatmul.mubr.f32.gmra.mrb[0].mxu0 %v331
    %v430 = vpop.f32.mrb[0].mxu0
    %v431 = vadd.f32 %v357, %v430
    %v432 = vpop.f32.mrb[0].mxu0
    %433 = vmatprep.mubr.f32.mxu0 0.0
    %434 = vmatmul.mubr.f32.gmra.mrb[0].mxu0 %v332
    %v435 = vpop.f32.mrb[0].mxu0
    %v436 = vadd.f32 %v357, %v435
    %v437 = vpop.f32.mrb[0].mxu0
    %438 = vmatprep.mubr.f32.mxu0 0.0
    %439 = vmatmul.mubr.f32.gmra.mrb[0].mxu0 %v333
    %v440 = vpop.f32.mrb[0].mxu0
    %v441 = vadd.f32 %v357, %v440
    %v442 = vpop.f32.mrb[0].mxu0
    %443 = vmatprep.mubr.f32.mxu0 0.0
    %444 = vmatmul.mubr.f32.gmra.mrb[0].mxu0 %v334
    %v445 = vpop.f32.mrb[0].mxu0
    %v446 = vadd.f32 %v357, %v445
    %v447 = vpop.f32.mrb[0].mxu0
    %448 = vmatprep.mubr.f32.mxu0 0.0
    %449 = vmatmul.mubr.f32.gmra.mrb[0].mxu0 %v335
    %v450 = vpop.f32.mrb[0].mxu0
    %v451 = vadd.f32 %v357, %v450
    %v452 = vpop.f32.mrb[0].mxu0
    %453 = vdwg.mxu0
    %454 = vst [vmem:[#allocation10] sm:$0xff] %v426
    %455 = vst [vmem:[#allocation10 + $0x8] sm:$0xff] %v431
    %456 = vst [vmem:[#allocation10 + $0x10] sm:$0xff] %v436
    %457 = vst [vmem:[#allocation10 + $0x18] sm:$0xff] %v441
    %458 = vst [vmem:[#allocation10 + $0x20] sm:$0xff] %v446
    %459 = vst [vmem:[#allocation10 + $0x28] sm:$0xff] %v451
    // Predicated region
    $region46: #{tpu_custom_call.1} parent=1 // pred_check
      _
    $region47: #{tpu_custom_call.1} parent=1 // pred_check_branch
      %461 = sbr.rel (0) target = $region49
    $region48: #{tpu_custom_call.1} parent=1 // pred_region
      %s463 = ssub.s32 768, 768
      %464 = vsyncadd [#allocation4], %s463
      %s465 = sshll.u32 [#allocation10], 4
      %s466 = int_to_ptr.vmem [resolvable:$true] %s465
      %471 = dma.vmem_to_hbm [thread:$0]  %s466, 768, %s7, [#allocation4], 128, 128, 8
    $region49: #{tpu_custom_call.1} parent=1 // pred_fallthru
      _
    // Predicated region
    $region50: #{tpu_custom_call.1} parent=1 // pred_check
      _
    $region51: #{tpu_custom_call.1} parent=1 // pred_check_branch
      %473 = sbr.rel (0) target = $region53
    $region52: #{tpu_custom_call.1} parent=1 // pred_region
      %474 = dma.done [#allocation4], 768
    $region53: #{tpu_custom_call.1} parent=1 // pred_fallthru
      _
    %475 = vsyncpa [#allocation3], 1
    %476 = vsyncpa [#allocation6], 1
    %477 = vsyncpa [#allocation9], 1
    %478 = vsyncpa [#allocation4], 1

</llo_original>
